<compile_context>
chip_gen: v5e
topology: v5e:2x2
jax: 0.10.0
libtpu: 0.0.40
codegen_flags: <defaults>
</compile_context>

<pallas_src>
import jax
import jax.numpy as jnp
from jax.experimental import pallas as pl
from jax.experimental.pallas import tpu as pltpu


def _round_up(n, m):
    return ((n + m - 1) // m) * m


def hypermodel_kernel(x_ref, w1_ref, b1_ref, w2_ref, b2_ref, w3_ref, b3_ref, o_ref):
    """One (TB, d_in) batch tile of the fused 3-layer MLP forward.

    Layers 1/2 run on the MXU with f32 accumulation; bias + ReLU on the VPU in f32.
    The out_features==1 head is an elementwise multiply + lane reduce (VPU + XLU).
    """
    x = x_ref[...]

    # Layer 1: x @ W1^T + b1, ReLU   (W pre-transposed to (in, out) at param prep)
    h1 = jnp.dot(x, w1_ref[...], preferred_element_type=jnp.float32) + b1_ref[...]
    h1 = jnp.maximum(h1, 0.0)

    # Layer 2: h1 @ W2^T + b2, ReLU  (cast back to weight dtype so a bf16 run feeds the
    # MXU bf16 inputs; accumulation stays f32; no-op in the f32 path)
    h2 = jnp.dot(h1.astype(w2_ref.dtype), w2_ref[...],
                 preferred_element_type=jnp.float32) + b2_ref[...]
    h2 = jnp.maximum(h2, 0.0)

    # Layer 3 (out_features == 1): VPU multiply + lane reduce, scalar bias from SMEM.
    out = jnp.sum(h2 * w3_ref[...], axis=-1, keepdims=True) + b3_ref[0, 0]
    o_ref[...] = out.astype(o_ref.dtype)


def prepare_params(params, compute_dtype=jnp.float32):
    """One-time parameter prep (hoisted out of the per-call path).

    PyTorch nn.Linear stores weight as (out, in); layers 1/2 are pre-transposed to
    (in, out) so the kernel does lane-friendly x @ Wt on the MXU. Layer 3 has
    out_features==1, so its (1, in) weight row is used as-is by the reduce head.
    Biases stay f32 (f32 epilogue on all generations, incl. v5e); inputs/weights may
    be bf16 for the memory-bound large-B regime on v6e/v7x.
    """
    return {
        "w1t": params["w1"].T.astype(compute_dtype),            # (d_in, h1)
        "b1": params["b1"].reshape(1, -1).astype(jnp.float32),  # (1, h1)
        "w2t": params["w2"].T.astype(compute_dtype),            # (h1, h2)
        "b2": params["b2"].reshape(1, -1).astype(jnp.float32),  # (1, h2)
        "w3_row": params["w3"].astype(compute_dtype),           # (1, h2) as stored
        "b3": params["b3"].reshape(1, 1).astype(jnp.float32),   # scalar -> SMEM
        "compute_dtype": compute_dtype,
    }


def hypermodel_forward(x, prepared, *, tile_b=2048):
    """HyperModel.forward: self.network(x).view(-1).  x: (B, d_in)."""
    B, d_in = x.shape
    h1d = prepared["w1t"].shape[1]
    h2d = prepared["w2t"].shape[1]

    x = x.astype(prepared["compute_dtype"])

    # Batch tile: multiple of 8 (sublane), capped so double-buffered tiles stay tiny
    # vs every generation's scoped VMEM default (incl. v7x's smaller 64 MiB VMEM).
    tb = min(tile_b, _round_up(B, 8))
    b_pad = _round_up(B, tb)
    if b_pad != B:
        x = jnp.pad(x, ((0, b_pad - B), (0, 0)))
    grid = (b_pad // tb,)

    out = pl.pallas_call(
        hypermodel_kernel,
        out_shape=jax.ShapeDtypeStruct((b_pad, 1), jnp.float32),
        grid=grid,
        in_specs=[
            pl.BlockSpec((tb, d_in), lambda i: (i, 0)),          # x: streamed per tile
            pl.BlockSpec((d_in, h1d), lambda i: (0, 0)),         # W1^T: resident
            pl.BlockSpec((1, h1d), lambda i: (0, 0)),            # b1
            pl.BlockSpec((h1d, h2d), lambda i: (0, 0)),          # W2^T
            pl.BlockSpec((1, h2d), lambda i: (0, 0)),            # b2
            pl.BlockSpec((1, h2d), lambda i: (0, 0)),            # w3 row
            pl.BlockSpec(memory_space=pltpu.MemorySpace.SMEM),   # b3 scalar in SMEM
        ],
        out_specs=pl.BlockSpec((tb, 1), lambda i: (i, 0)),
        compiler_params=pltpu.CompilerParams(
            dimension_semantics=("parallel",),  # shards batch tiles over v7x's 2 TCs
        ),
    )(
        x,
        prepared["w1t"], prepared["b1"],
        prepared["w2t"], prepared["b2"],
        prepared["w3_row"], prepared["b3"],
    )

    # HyperModel.forward: return self.network(x).view(-1)
    return out[:B].reshape(-1)


def init_params(key, dimensions):
    """Deterministic init mimicking nn.Linear's U(-1/sqrt(fan_in), 1/sqrt(fan_in))."""
    params = {}
    keys = jax.random.split(key, 2 * (len(dimensions) - 1))
    for i in range(len(dimensions) - 1):
        fan_in, fan_out = dimensions[i], dimensions[i + 1]
        bound = 1.0 / jnp.sqrt(fan_in)
        params[f"w{i + 1}"] = jax.random.uniform(
            keys[2 * i], (fan_out, fan_in), jnp.float32, minval=-bound, maxval=bound
        )
        params[f"b{i + 1}"] = jax.random.uniform(
            keys[2 * i + 1], (fan_out,), jnp.float32, minval=-bound, maxval=bound
        )
    return params


def reference_forward(x, params):
    """Plain-JAX reference matching the PyTorch forward semantics."""
    h = jnp.maximum(x @ params["w1"].T + params["b1"], 0.0)
    h = jnp.maximum(h @ params["w2"].T + params["b2"], 0.0)
    out = h @ params["w3"].T + params["b3"]
    return out.reshape(-1)


if __name__ == "__main__":
    dimensions = [32, 64, 64, 1]  # HyperModel(dimensions, 'relu')

    key = jax.random.PRNGKey(0)
    k_params, k_x1, k_x2 = jax.random.split(key, 3)
    params = init_params(k_params, dimensions)

    # One-time parameter prep (transposes hoisted out of the per-call path).
    prepared_f32 = prepare_params(params, jnp.float32)

    # Small-batch correctness check (single-tile grid).
    x_small = jax.random.normal(k_x1, (64, dimensions[0]), dtype=jnp.float32)
    y = jax.block_until_ready(hypermodel_forward(x_small, prepared_f32))
    y_ref = reference_forward(x_small, params)
    assert y.shape == (64 * dimensions[-1],)
    assert jnp.allclose(y, y_ref, atol=1e-5, rtol=1e-5)

    # Multi-tile batch exercising the pipelined grid (2 tiles of 2048 rows).
    x_big = jax.random.normal(k_x2, (4096, dimensions[0]), dtype=jnp.float32)
    y_big = jax.block_until_ready(hypermodel_forward(x_big, prepared_f32))
    y_big_ref = reference_forward(x_big, params)
    assert y_big.shape == (4096 * dimensions[-1],)
    assert jnp.allclose(y_big, y_big_ref, atol=1e-4, rtol=1e-4)

    # bf16 inputs/weights (halves the dominant HBM x-stream on v6e/v7x); f32
    # accumulation + f32 epilogue keep the result close to the f32 reference.
    prepared_bf16 = prepare_params(params, jnp.bfloat16)
    y_bf16 = jax.block_until_ready(hypermodel_forward(x_big, prepared_bf16))
    assert jnp.all(jnp.isfinite(y_bf16))
    assert jnp.allclose(y_bf16, y_big_ref, atol=5e-2, rtol=5e-2)

    print("KERNEL_OK")
</pallas_src>

<mosaic_0001>
module attributes {stable_mosaic.version = 11 : i64} {
  func.func @hypermodel_kernel(%arg0: i32, %arg1: memref<64x32xf32, #tpu.memory_space<vmem>>, %arg2: memref<32x64xf32, #tpu.memory_space<vmem>>, %arg3: memref<1x64xf32, #tpu.memory_space<vmem>>, %arg4: memref<64x64xf32, #tpu.memory_space<vmem>>, %arg5: memref<1x64xf32, #tpu.memory_space<vmem>>, %arg6: memref<1x64xf32, #tpu.memory_space<vmem>>, %arg7: memref<1x1xf32, #tpu.memory_space<smem>>, %arg8: memref<64x1xf32, #tpu.memory_space<vmem>>) attributes {dimension_semantics = [#tpu.dimension_semantics<parallel>], iteration_bounds = array<i64: 1>, scalar_prefetch = 0 : i64, scratch_operands = 0 : i64, tpu.core_type = #tpu.core_type<tc>, window_params = [{transform_indices = @transform_0, window_bounds = array<i64: 64, 32>}, {pipeline_mode = #tpu.pipeline_mode<synchronous>, transform_indices = @transform_1, window_bounds = array<i64: 32, 64>}, {pipeline_mode = #tpu.pipeline_mode<synchronous>, transform_indices = @transform_2, window_bounds = array<i64: 1, 64>}, {pipeline_mode = #tpu.pipeline_mode<synchronous>, transform_indices = @transform_3, window_bounds = array<i64: 64, 64>}, {pipeline_mode = #tpu.pipeline_mode<synchronous>, transform_indices = @transform_4, window_bounds = array<i64: 1, 64>}, {pipeline_mode = #tpu.pipeline_mode<synchronous>, transform_indices = @transform_5, window_bounds = array<i64: 1, 64>}, {transform_indices = @transform_6, window_bounds = array<i64: 1, 1>}, {transform_indices = @transform_7, window_bounds = array<i64: 64, 1>}]} {
    %c0 = arith.constant 0 : index
    %c0_0 = arith.constant 0 : index
    %0 = vector.load %arg1[%c0, %c0_0] : memref<64x32xf32, #tpu.memory_space<vmem>>, vector<64x32xf32>
    %c0_1 = arith.constant 0 : index
    %c0_2 = arith.constant 0 : index
    %1 = vector.load %arg2[%c0_1, %c0_2] : memref<32x64xf32, #tpu.memory_space<vmem>>, vector<32x64xf32>
    %cst = arith.constant dense<0.000000e+00> : vector<64x64xf32>
    %2 = tpu.matmul %0, %1, %cst {dimension_numbers = #tpu.dot_dimension_numbers<[1], [0], [0], [1], [0, 0, 1, 1], [], []>} : vector<64x32xf32>, vector<32x64xf32>, vector<64x64xf32> -> vector<64x64xf32>
    %c0_3 = arith.constant 0 : index
    %c0_4 = arith.constant 0 : index
    %3 = vector.load %arg3[%c0_3, %c0_4] : memref<1x64xf32, #tpu.memory_space<vmem>>, vector<1x64xf32>
    %4 = vector.broadcast %3 : vector<1x64xf32> to vector<64x64xf32>
    %5 = arith.addf %2, %4 : vector<64x64xf32>
    %cst_5 = arith.constant 0.000000e+00 : f32
    %6 = vector.broadcast %cst_5 : f32 to vector<64x64xf32>
    %7 = arith.maximumf %5, %6 : vector<64x64xf32>
    %c0_6 = arith.constant 0 : index
    %c0_7 = arith.constant 0 : index
    %8 = vector.load %arg4[%c0_6, %c0_7] : memref<64x64xf32, #tpu.memory_space<vmem>>, vector<64x64xf32>
    %cst_8 = arith.constant dense<0.000000e+00> : vector<64x64xf32>
    %9 = tpu.matmul %7, %8, %cst_8 {dimension_numbers = #tpu.dot_dimension_numbers<[1], [0], [0], [1], [0, 0, 1, 1], [], []>} : vector<64x64xf32>, vector<64x64xf32>, vector<64x64xf32> -> vector<64x64xf32>
    %c0_9 = arith.constant 0 : index
    %c0_10 = arith.constant 0 : index
    %10 = vector.load %arg5[%c0_9, %c0_10] : memref<1x64xf32, #tpu.memory_space<vmem>>, vector<1x64xf32>
    %11 = vector.broadcast %10 : vector<1x64xf32> to vector<64x64xf32>
    %12 = arith.addf %9, %11 : vector<64x64xf32>
    %cst_11 = arith.constant 0.000000e+00 : f32
    %13 = vector.broadcast %cst_11 : f32 to vector<64x64xf32>
    %14 = arith.maximumf %12, %13 : vector<64x64xf32>
    %c0_12 = arith.constant 0 : index
    %c0_13 = arith.constant 0 : index
    %15 = vector.load %arg6[%c0_12, %c0_13] : memref<1x64xf32, #tpu.memory_space<vmem>>, vector<1x64xf32>
    %16 = vector.broadcast %15 : vector<1x64xf32> to vector<64x64xf32>
    %17 = arith.mulf %14, %16 : vector<64x64xf32>
    %cst_14 = arith.constant dense<0.000000e+00> : vector<64xf32>
    %18 = vector.multi_reduction <add>, %17, %cst_14 [1] : vector<64x64xf32> to vector<64xf32>
    %19 = vector.shape_cast %18 : vector<64xf32> to vector<64x1xf32>
    %c0_15 = arith.constant 0 : index
    %c0_16 = arith.constant 0 : index
    %20 = memref.load %arg7[%c0_15, %c0_16] : memref<1x1xf32, #tpu.memory_space<smem>>
    %21 = vector.broadcast %20 : f32 to vector<64x1xf32>
    %22 = arith.addf %19, %21 : vector<64x1xf32>
    %c0_17 = arith.constant 0 : index
    %c0_18 = arith.constant 0 : index
    %23 = vector.load %arg8[%c0_17, %c0_18] : memref<64x1xf32, #tpu.memory_space<vmem>>, vector<64x1xf32>
    tpu.vector_store %arg8[%c0_17, %c0_18], %22 {strides = array<i32>} : memref<64x1xf32, #tpu.memory_space<vmem>>, vector<64x1xf32>,
    return
  }
  func.func @transform_0(%arg0: i32) -> (i32, i32) {
    %c0_i32 = arith.constant 0 : i32
    %c0_i32_0 = arith.constant 0 : i32
    return %arg0, %c0_i32 : i32, i32
  }
  func.func @transform_1(%arg0: i32) -> (i32, i32) {
    %c0_i32 = arith.constant 0 : i32
    %c0_i32_0 = arith.constant 0 : i32
    %c0_i32_1 = arith.constant 0 : i32
    return %c0_i32, %c0_i32_0 : i32, i32
  }
  func.func @transform_2(%arg0: i32) -> (i32, i32) {
    %c0_i32 = arith.constant 0 : i32
    %c0_i32_0 = arith.constant 0 : i32
    %c0_i32_1 = arith.constant 0 : i32
    return %c0_i32, %c0_i32_0 : i32, i32
  }
  func.func @transform_3(%arg0: i32) -> (i32, i32) {
    %c0_i32 = arith.constant 0 : i32
    %c0_i32_0 = arith.constant 0 : i32
    %c0_i32_1 = arith.constant 0 : i32
    return %c0_i32, %c0_i32_0 : i32, i32
  }
  func.func @transform_4(%arg0: i32) -> (i32, i32) {
    %c0_i32 = arith.constant 0 : i32
    %c0_i32_0 = arith.constant 0 : i32
    %c0_i32_1 = arith.constant 0 : i32
    return %c0_i32, %c0_i32_0 : i32, i32
  }
  func.func @transform_5(%arg0: i32) -> (i32, i32) {
    %c0_i32 = arith.constant 0 : i32
    %c0_i32_0 = arith.constant 0 : i32
    %c0_i32_1 = arith.constant 0 : i32
    return %c0_i32, %c0_i32_0 : i32, i32
  }
  func.func @transform_6(%arg0: i32) -> (i32, i32) {
    %c0_i32 = arith.constant 0 : i32
    %c0_i32_0 = arith.constant 0 : i32
    %c0_i32_1 = arith.constant 0 : i32
    return %c0_i32, %c0_i32_0 : i32, i32
  }
  func.func @transform_7(%arg0: i32) -> (i32, i32) {
    %c0_i32 = arith.constant 0 : i32
    %c0_i32_0 = arith.constant 0 : i32
    return %arg0, %c0_i32 : i32, i32
  }
}

</mosaic_0001>

<llo_original>
// kernel: tpu_custom_call.1
$region0: #{tpu_custom_call.1}
  #allocation0 [shape = 'u32[]', space=smem, size = 0x4, offset = 0x4, fixed_abs, tag = 'smem constant byte address 0x4 - core index']
  #allocation1 [shape = 'u32[72,128]{1,0:T(1,128)}', space=vmem, size = 0x9000, scoped, tag = 'internal scratch']
  #allocation2 [shape = 'f32[1,1]{1,0:T(1,128)S(6)}', space=smem, size = 0x200, scoped, tag = 'scoped memory for tpu_custom_call.1']
  %s0 = inlined_call_operand.vmem [shape: f32[64,32], index: 0, kind: input, shape index: {}]
  %s1 = inlined_call_operand.vmem [shape: f32[32,64], index: 1, kind: input, shape index: {}]
  %s2 = inlined_call_operand.vmem [shape: f32[1,64], index: 2, kind: input, shape index: {}]
  %s3 = inlined_call_operand.vmem [shape: f32[64,64], index: 3, kind: input, shape index: {}]
  %s4 = inlined_call_operand.vmem [shape: f32[1,64], index: 4, kind: input, shape index: {}]
  %s5 = inlined_call_operand.vmem [shape: f32[1,64], index: 5, kind: input, shape index: {}]
  %s6 = inlined_call_operand.<no memory space> [shape: f32[1,1], index: 6, kind: input, shape index: {}]
  %s7 = inlined_call_operand.vmem [shape: f32[64,1], index: 7, kind: output, shape index: {}]
  %s8 = sld [smem:[#allocation0]]
  $region38: #{tpu_custom_call.1} parent=0
    _
  %s10 = ssub.s32 1, %s8
  %s11 = scalar_select 0, %s10, %s8
  %12 = sst [smem:[#allocation2]] %s6
  // Predicated region
  $region2: #{tpu_custom_call.1} parent=0 // pred_check
    _
  $region3: #{tpu_custom_call.1} parent=0 // pred_check_branch
    %14 = sbr.rel (0) target = $region5
  $region4: #{tpu_custom_call.1} parent=0 // pred_region
    _
  $region5: #{tpu_custom_call.1} parent=0 // pred_fallthru
    _
  // Predicated region
  $region6: #{tpu_custom_call.1} parent=0 // pred_check
    _
  $region7: #{tpu_custom_call.1} parent=0 // pred_check_branch
    %16 = sbr.rel (0) target = $region9
  $region8: #{tpu_custom_call.1} parent=0 // pred_region
    _
  $region9: #{tpu_custom_call.1} parent=0 // pred_fallthru
    _
  // Predicated region
  $region10: #{tpu_custom_call.1} parent=0 // pred_check
    _
  $region11: #{tpu_custom_call.1} parent=0 // pred_check_branch
    %18 = sbr.rel (0) target = $region13
  $region12: #{tpu_custom_call.1} parent=0 // pred_region
    _
  $region13: #{tpu_custom_call.1} parent=0 // pred_fallthru
    _
  // Predicated region
  $region14: #{tpu_custom_call.1} parent=0 // pred_check
    _
  $region15: #{tpu_custom_call.1} parent=0 // pred_check_branch
    %20 = sbr.rel (0) target = $region17
  $region16: #{tpu_custom_call.1} parent=0 // pred_region
    _
  $region17: #{tpu_custom_call.1} parent=0 // pred_fallthru
    _
  // Predicated region
  $region18: #{tpu_custom_call.1} parent=0 // pred_check
    _
  $region19: #{tpu_custom_call.1} parent=0 // pred_check_branch
    %22 = sbr.rel (0) target = $region21
  $region20: #{tpu_custom_call.1} parent=0 // pred_region
    _
  $region21: #{tpu_custom_call.1} parent=0 // pred_fallthru
    _
  // Predicated region
  $region22: #{tpu_custom_call.1} parent=0 // pred_check
    _
  $region23: #{tpu_custom_call.1} parent=0 // pred_check_branch
    %24 = sbr.rel (0) target = $region25
  $region24: #{tpu_custom_call.1} parent=0 // pred_region
    _
  $region25: #{tpu_custom_call.1} parent=0 // pred_fallthru
    _
  // Predicated region
  $region26: #{tpu_custom_call.1} parent=0 // pred_check
    _
  $region27: #{tpu_custom_call.1} parent=0 // pred_check_branch
    %26 = sbr.rel (0) target = $region29
  $region28: #{tpu_custom_call.1} parent=0 // pred_region
    _
  $region29: #{tpu_custom_call.1} parent=0 // pred_fallthru
    _
  %v27 = vld [vmem:[%s0] sm:$0xff]
  %v28 = vld [vmem:[%s0 + $0x8] sm:$0xff]
  %v29 = vld [vmem:[%s0 + $0x10] sm:$0xff]
  %v30 = vld [vmem:[%s0 + $0x18] sm:$0xff]
  %v31 = vld [vmem:[%s0 + $0x20] sm:$0xff]
  %v32 = vld [vmem:[%s0 + $0x28] sm:$0xff]
  %v33 = vld [vmem:[%s0 + $0x30] sm:$0xff]
  %v34 = vld [vmem:[%s0 + $0x38] sm:$0xff]
  %v35 = vld [vmem:[%s1] sm:$0xff]
  %v36 = vld [vmem:[%s1 + $0x8] sm:$0xff]
  %v37 = vld [vmem:[%s1 + $0x10] sm:$0xff]
  %v38 = vld [vmem:[%s1 + $0x18] sm:$0xff]
  %v39 = vld [vmem:[%s2] sm:$0x1]
  %v41 = vperm.slane %v39, 0
  %vm43 = vcmask 261120
  %v45 = vsel %vm43, %v27, 0
  %v48 = vsel %vm43, %v28, 0
  %v51 = vsel %vm43, %v29, 0
  %v54 = vsel %vm43, %v30, 0
  %v57 = vsel %vm43, %v31, 0
  %v60 = vsel %vm43, %v32, 0
  %v63 = vsel %vm43, %v33, 0
  %v66 = vsel %vm43, %v34, 0
  %68 = vmatpush.msra.mxu0 0.0
  %69 = vmatpush.msra.mxu0 0.0
  %70 = vmatpush.msra.mxu0 0.0
  %71 = vmatpush.msra.mxu0 0.0
  %72 = vmatpush.msra.mxu0 0.0
  %73 = vmatpush.msra.mxu0 0.0
  %74 = vmatpush.msra.mxu0 0.0
  %75 = vmatpush.msra.mxu0 0.0
  %76 = vmatpush.msra.mxu0 0.0
  %77 = vmatpush.msra.mxu0 0.0
  %78 = vmatpush.msra.mxu0 0.0
  %79 = vmatpush.msra.mxu0 0.0
  %80 = vmatpush.msra.mxu0 %v38
  %81 = vmatpush.msra.mxu0 %v37
  %82 = vmatpush.msra.mxu0 %v36
  %83 = vmatpush.msra.mxu0 %v35
  %84 = vmatmul.f32.gmra.mxu0 %v45
  %v85 = vpop.f32.mrf.mxu0
  %v86 = vadd.f32 %v41, %v85
  %87 = vmatmul.f32.gmra.mxu0 %v48
  %v88 = vpop.f32.mrf.mxu0
  %v89 = vadd.f32 %v41, %v88
  %90 = vmatmul.f32.gmra.mxu0 %v51
  %v91 = vpop.f32.mrf.mxu0
  %v92 = vadd.f32 %v41, %v91
  %93 = vmatmul.f32.gmra.mxu0 %v54
  %v94 = vpop.f32.mrf.mxu0
  %v95 = vadd.f32 %v41, %v94
  %96 = vmatmul.f32.gmra.mxu0 %v57
  %v97 = vpop.f32.mrf.mxu0
  %v98 = vadd.f32 %v41, %v97
  %99 = vmatmul.f32.gmra.mxu0 %v60
  %v100 = vpop.f32.mrf.mxu0
  %v101 = vadd.f32 %v41, %v100
  %102 = vmatmul.f32.gmra.mxu0 %v63
  %v103 = vpop.f32.mrf.mxu0
  %v104 = vadd.f32 %v41, %v103
  %105 = vmatmul.f32.gmra.mxu0 %v66
  %v106 = vpop.f32.mrf.mxu0
  %v107 = vadd.f32 %v41, %v106
  %108 = vdwg.mxu0
  %v109 = vmax.f32 %v86, 0.0
  %v110 = vmax.f32 %v89, 0.0
  %v111 = vmax.f32 %v92, 0.0
  %v112 = vmax.f32 %v95, 0.0
  %v113 = vmax.f32 %v98, 0.0
  %v114 = vmax.f32 %v101, 0.0
  %v115 = vmax.f32 %v104, 0.0
  %v116 = vmax.f32 %v107, 0.0
  %v117 = vld [vmem:[%s3] sm:$0xff]
  %v118 = vld [vmem:[%s3 + $0x8] sm:$0xff]
  %v119 = vld [vmem:[%s3 + $0x10] sm:$0xff]
  %v120 = vld [vmem:[%s3 + $0x18] sm:$0xff]
  %v121 = vld [vmem:[%s3 + $0x20] sm:$0xff]
  %v122 = vld [vmem:[%s3 + $0x28] sm:$0xff]
  %v123 = vld [vmem:[%s3 + $0x30] sm:$0xff]
  %v124 = vld [vmem:[%s3 + $0x38] sm:$0xff]
  %v125 = vld [vmem:[%s4] sm:$0x1]
  %v127 = vperm.slane %v125, 0
  %vm129 = vcmask 523264
  %v131 = vsel %vm129, %v109, 0
  %v134 = vsel %vm129, %v110, 0
  %v137 = vsel %vm129, %v111, 0
  %v140 = vsel %vm129, %v112, 0
  %v143 = vsel %vm129, %v113, 0
  %v146 = vsel %vm129, %v114, 0
  %v149 = vsel %vm129, %v115, 0
  %v152 = vsel %vm129, %v116, 0
  %154 = vmatpush.msra.mxu0 0.0
  %155 = vmatpush.msra.mxu0 0.0
  %156 = vmatpush.msra.mxu0 0.0
  %157 = vmatpush.msra.mxu0 0.0
  %158 = vmatpush.msra.mxu0 0.0
  %159 = vmatpush.msra.mxu0 0.0
  %160 = vmatpush.msra.mxu0 0.0
  %161 = vmatpush.msra.mxu0 0.0
  %162 = vmatpush.msra.mxu0 %v124
  %163 = vmatpush.msra.mxu0 %v123
  %164 = vmatpush.msra.mxu0 %v122
  %165 = vmatpush.msra.mxu0 %v121
  %166 = vmatpush.msra.mxu0 %v120
  %167 = vmatpush.msra.mxu0 %v119
  %168 = vmatpush.msra.mxu0 %v118
  %169 = vmatpush.msra.mxu0 %v117
  %170 = vmatmul.f32.gmra.mxu0 %v131
  %v171 = vpop.f32.mrf.mxu0
  %v172 = vadd.f32 %v127, %v171
  %173 = vmatmul.f32.gmra.mxu0 %v134
  %v174 = vpop.f32.mrf.mxu0
  %v175 = vadd.f32 %v127, %v174
  %176 = vmatmul.f32.gmra.mxu0 %v137
  %v177 = vpop.f32.mrf.mxu0
  %v178 = vadd.f32 %v127, %v177
  %179 = vmatmul.f32.gmra.mxu0 %v140
  %v180 = vpop.f32.mrf.mxu0
  %v181 = vadd.f32 %v127, %v180
  %182 = vmatmul.f32.gmra.mxu0 %v143
  %v183 = vpop.f32.mrf.mxu0
  %v184 = vadd.f32 %v127, %v183
  %185 = vmatmul.f32.gmra.mxu0 %v146
  %v186 = vpop.f32.mrf.mxu0
  %v187 = vadd.f32 %v127, %v186
  %188 = vmatmul.f32.gmra.mxu0 %v149
  %v189 = vpop.f32.mrf.mxu0
  %v190 = vadd.f32 %v127, %v189
  %191 = vmatmul.f32.gmra.mxu0 %v152
  %v192 = vpop.f32.mrf.mxu0
  %v193 = vadd.f32 %v127, %v192
  %194 = vdwg.mxu0
  %v195 = vmax.f32 %v172, 0.0
  %v196 = vmax.f32 %v175, 0.0
  %v197 = vmax.f32 %v178, 0.0
  %v198 = vmax.f32 %v181, 0.0
  %v199 = vmax.f32 %v184, 0.0
  %v200 = vmax.f32 %v187, 0.0
  %v201 = vmax.f32 %v190, 0.0
  %v202 = vmax.f32 %v193, 0.0
  %v203 = vld [vmem:[%s5] sm:$0x1]
  %v205 = vperm.slane %v203, 0
  %v207 = vmul.f32 %v195, %v205
  %v208 = vmul.f32 %v196, %v205
  %v209 = vmul.f32 %v197, %v205
  %v210 = vmul.f32 %v198, %v205
  %v211 = vmul.f32 %v199, %v205
  %v212 = vmul.f32 %v200, %v205
  %v213 = vmul.f32 %v201, %v205
  %v214 = vmul.f32 %v202, %v205
  %v215 = vsel %vm129, %v207, 0.0
  %216 = vadd.xlane.f32.xlu0 %v215
  %v217 = vpop.xlane.xlu0 %216
  %v218 = vsel %vm129, %v208, 0.0
  %219 = vadd.xlane.f32.xlu0 %v218
  %v220 = vpop.xlane.xlu0 %219
  %v221 = vsel %vm129, %v209, 0.0
  %222 = vadd.xlane.f32.xlu0 %v221
  %v223 = vpop.xlane.xlu0 %222
  %v224 = vsel %vm129, %v210, 0.0
  %225 = vadd.xlane.f32.xlu0 %v224
  %v226 = vpop.xlane.xlu0 %225
  %v227 = vsel %vm129, %v211, 0.0
  %228 = vadd.xlane.f32.xlu0 %v227
  %v229 = vpop.xlane.xlu0 %228
  %v230 = vsel %vm129, %v212, 0.0
  %231 = vadd.xlane.f32.xlu0 %v230
  %v232 = vpop.xlane.xlu0 %231
  %v233 = vsel %vm129, %v213, 0.0
  %234 = vadd.xlane.f32.xlu0 %v233
  %v235 = vpop.xlane.xlu0 %234
  %v236 = vsel %vm129, %v214, 0.0
  %237 = vadd.xlane.f32.xlu0 %v236
  %v238 = vpop.xlane.xlu0 %237
  %s239 = sld [smem:[#allocation2]]
  %v240 = vstv %s239
  %v241 = vadd.f32 %v217, %v240
  %v242 = vadd.f32 %v220, %v240
  %v243 = vadd.f32 %v223, %v240
  %v244 = vadd.f32 %v226, %v240
  %v245 = vadd.f32 %v229, %v240
  %v246 = vadd.f32 %v232, %v240
  %v247 = vadd.f32 %v235, %v240
  %v248 = vadd.f32 %v238, %v240
  %vm249 = vcmask 7168
  %250 = vst.msk [vmem:[%s7] sm:$0xff] %vm249, %v241
  %251 = vst.msk [vmem:[%s7 + $0x8] sm:$0xff] %vm249, %v242
  %252 = vst.msk [vmem:[%s7 + $0x10] sm:$0xff] %vm249, %v243
  %253 = vst.msk [vmem:[%s7 + $0x18] sm:$0xff] %vm249, %v244
  %254 = vst.msk [vmem:[%s7 + $0x20] sm:$0xff] %vm249, %v245
  %255 = vst.msk [vmem:[%s7 + $0x28] sm:$0xff] %vm249, %v246
  %256 = vst.msk [vmem:[%s7 + $0x30] sm:$0xff] %vm249, %v247
  %257 = vst.msk [vmem:[%s7 + $0x38] sm:$0xff] %vm249, %v248
  // Predicated region
  $region30: #{tpu_custom_call.1} parent=0 // pred_check
    _
  $region31: #{tpu_custom_call.1} parent=0 // pred_check_branch
    %259 = sbr.rel (0) target = $region33
  $region32: #{tpu_custom_call.1} parent=0 // pred_region
    _
  $region33: #{tpu_custom_call.1} parent=0 // pred_fallthru
    _
  // Predicated region
  $region34: #{tpu_custom_call.1} parent=0 // pred_check
    _
  $region35: #{tpu_custom_call.1} parent=0 // pred_check_branch
    %261 = sbr.rel (0) target = $region37
  $region36: #{tpu_custom_call.1} parent=0 // pred_region
    _
  $region37: #{tpu_custom_call.1} parent=0 // pred_fallthru
    _

</llo_original>
